<compile_context>
chip_gen: v7x
topology: tpu7x:2x2x1
jax: 0.10.0
libtpu: 0.0.40
codegen_flags: <defaults>
</compile_context>

<pallas_src>
import functools

import jax
import jax.numpy as jnp
import numpy as np
from jax import lax
from jax.experimental import pallas as pl
from jax.experimental.pallas import tpu as pltpu


def _encdec_kernel(x_ref, we_ref, wd_ref, eb_ref, db_ref, m_ref, o_ref, *, W):
    """Fused encoder+decoder for one batch block, channels-first lane-flat layout.

    x_ref  : (Cin, L)     input block, L = Bt*H*W lanes (lane = b_local*H*W + pixel)
    we_ref : (He, 9*Cin)  encoder weights (BN scale folded), col = tap*Cin + ci
    wd_ref : (Co, 9*He)   decoder weights,                   col = tap*He  + ci
    eb_ref : (He, 1)      encoder shift (conv bias + BN shift folded)
    db_ref : (Co, 1)      decoder bias
    m_ref  : (9, L)       per-tap halo masks (precomputed host-side, VMEM-resident)
    o_ref  : (Co, L)      logits
    """
    L = x_ref.shape[-1]
    m = m_ref[...]                                             # (9, L) f32

    # tap index t = (dy+1)*3 + (dx+1); flat pixel offset of that tap
    offs = [dy * W + dx for dy in (-1, 0, 1) for dx in (-1, 0, 1)]

    def conv3x3(inp, w_mat):
        # Build the masked/shifted tap stack (9*Cin, L); ONE MXU matmul per conv.
        taps = []
        for t, off in enumerate(offs):
            if off == 0:
                taps.append(inp)                               # center tap: no mask needed
            else:
                s = pltpu.roll(inp, shift=(-off) % L, axis=1)  # s[q] = inp[q + off]  (XLU)
                taps.append(s * m[t:t + 1, :])                 # zero halo & cross-image wraps
        xs = jnp.concatenate(taps, axis=0)                     # (9*Cin, L)
        return jnp.dot(w_mat, xs, preferred_element_type=jnp.float32)

    x = x_ref[...].astype(jnp.float32)                         # (Cin, L)
    h = jnp.maximum(conv3x3(x, we_ref[...]) + eb_ref[...], 0.0)   # enc conv (+bias+BN) + ReLU
    y = conv3x3(h, wd_ref[...]) + db_ref[...]                     # dec conv + bias (logits)
    o_ref[...] = y.astype(o_ref.dtype)                             # lane-dense store


@functools.partial(jax.jit, static_argnames=("W",))
def encdec_fused(x_cl, we, wd, eb, db, masks, *, W):
    """x_cl: (Cin, Bpad*H*W) f32  ->  logits (Co, Bpad*H*W) f32."""
    Cin, Ltot = x_cl.shape
    He = we.shape[0]
    Co = wd.shape[0]
    L = masks.shape[1]          # lanes per grid step = Bt*H*W
    nblk = Ltot // L

    x_spec_kwargs = {}
    if nblk >= 3:
        # Deeper input pipeline to hide HBM fetch latency behind the tiny compute.
        x_spec_kwargs["pipeline_mode"] = pl.Buffered(3)

    kernel = functools.partial(_encdec_kernel, W=W)
    return pl.pallas_call(
        kernel,
        out_shape=jax.ShapeDtypeStruct((Co, Ltot), jnp.float32),
        grid=(nblk,),
        in_specs=[
            pl.BlockSpec((Cin, L), lambda b: (0, b), **x_spec_kwargs),
            # Constant-index params: DMA'd once, stay resident across grid steps.
            pl.BlockSpec((He, we.shape[1]), lambda b: (0, 0)),
            pl.BlockSpec((Co, wd.shape[1]), lambda b: (0, 0)),
            pl.BlockSpec((He, 1), lambda b: (0, 0)),
            pl.BlockSpec((Co, 1), lambda b: (0, 0)),
            pl.BlockSpec((9, L), lambda b: (0, 0)),
        ],
        out_specs=pl.BlockSpec((Co, L), lambda b: (0, b)),
        compiler_params=pltpu.CompilerParams(
            dimension_semantics=("parallel",)),
    )(x_cl, we, wd, eb, db, masks)


class EncoderDecoderPallas:
    """forward(x): x -> encoder -> decoder, returns logits (B, classes, H, W)."""

    def __init__(self, in_ch=4, hidden=8, classes=3, seed=0, batch_block=16):
        k = jax.random.PRNGKey(seed)
        k1, k2, k3, k4 = jax.random.split(k, 4)
        # Kaiming-normal, mode='fan_out', relu: std = sqrt(2 / (Cout*kH*kW))
        std_e = float(np.sqrt(2.0 / (hidden * 3 * 3)))
        std_d = float(np.sqrt(2.0 / (classes * 3 * 3)))
        # Canonical HWIO weights (also used by the pure-JAX reference).
        self.w_enc = jax.random.normal(k1, (3, 3, in_ch, hidden), jnp.float32) * std_e
        self.b_enc = jax.random.normal(k2, (hidden,), jnp.float32) * 0.01
        self.w_dec = jax.random.normal(k3, (3, 3, hidden, classes), jnp.float32) * std_d
        self.b_dec = jax.random.normal(k4, (classes,), jnp.float32) * 0.01
        # BatchNorm2d(hidden) eval-mode fold: gamma=1, beta=0, mean=0, var=1.
        eps = 1e-5
        gamma = jnp.ones((hidden,), jnp.float32)
        beta = jnp.zeros((hidden,), jnp.float32)
        rmean = jnp.zeros((hidden,), jnp.float32)
        rvar = jnp.ones((hidden,), jnp.float32)
        self.bn_scale = gamma / jnp.sqrt(rvar + eps)
        self.bn_shift = beta - rmean * self.bn_scale
        self.classes = classes
        self.batch_block = batch_block

        # --- Kernel-layout parameters (host side, once) ---
        # Collapsed per-conv weight matrices: (Cout, 9*Cin), col = tap*Cin + ci,
        # tap = ky*3 + kx.  BN scale is folded into the encoder weights.
        we_mat = jnp.transpose(self.w_enc, (3, 0, 1, 2)).reshape(hidden, 9 * in_ch)
        self.we_mat = we_mat * self.bn_scale[:, None]
        self.wd_mat = jnp.transpose(self.w_dec, (3, 0, 1, 2)).reshape(classes, 9 * hidden)
        # encoder: (conv + b)*scale + shift  ==  conv_scaled + (b*scale + shift)
        self.enc_shift = (self.b_enc * self.bn_scale + self.bn_shift).reshape(hidden, 1)
        self.dec_bias = self.b_dec.reshape(classes, 1)
        self._mask_cache = {}

    def _tap_masks(self, H, W, Bt):
        """(9, Bt*H*W) f32 halo masks, tap index t = (dy+1)*3 + (dx+1)."""
        key = (H, W, Bt)
        if key not in self._mask_cache:
            yy, xx = np.mgrid[0:H, 0:W]
            rows = []
            for dy in (-1, 0, 1):
                for dx in (-1, 0, 1):
                    ok = np.ones((H, W), dtype=bool)
                    if dy == -1:
                        ok &= yy >= 1
                    if dy == 1:
                        ok &= yy <= H - 2
                    if dx == -1:
                        ok &= xx >= 1
                    if dx == 1:
                        ok &= xx <= W - 2
                    rows.append(ok.reshape(-1))
            m = np.stack(rows, axis=0).astype(np.float32)          # (9, HW)
            self._mask_cache[key] = jnp.asarray(np.tile(m, (1, Bt)))
        return self._mask_cache[key]

    def forward(self, x_nchw):
        B, C, H, W = x_nchw.shape
        HW = H * W
        Bt = max(1, min(self.batch_block, B))
        nblk = -(-B // Bt)                      # cdiv
        Bpad = nblk * Bt
        assert (Bt * HW) % 128 == 0, "batch-block lane width must be a multiple of 128"

        x_flat = x_nchw.reshape(B, C, HW)
        if Bpad != B:
            pad = jnp.zeros((Bpad - B, C, HW), x_flat.dtype)
            x_flat = jnp.concatenate([x_flat, pad], axis=0)
        # Lane-dense channels-first slab: (C, Bpad*HW), lane index = b*HW + pixel.
        # (wrapper-side layout plumbing so the kernel stores/loads are lane-dense)
        x_cl = jnp.transpose(x_flat, (1, 0, 2)).reshape(C, Bpad * HW)

        masks = self._tap_masks(H, W, Bt)
        y_cl = encdec_fused(x_cl, self.we_mat, self.wd_mat, self.enc_shift,
                            self.dec_bias, masks, W=W)
        y = y_cl.reshape(self.classes, Bpad, HW).transpose(1, 0, 2)[:B]
        return y.reshape(B, self.classes, H, W)
    # TODO(synk): `predict` activation (softmax/sigmoid) is intentionally NOT applied
    # in forward -- the PyTorch forward returns logits.


def _ref_forward(model, x_nchw):
    """Pure-JAX reference (lax.conv) for correctness check."""
    dn = ("NHWC", "HWIO", "NHWC")
    x = jnp.transpose(x_nchw, (0, 2, 3, 1))
    h = lax.conv_general_dilated(x, model.w_enc, (1, 1), "SAME",
                                 dimension_numbers=dn) + model.b_enc
    h = h * model.bn_scale + model.bn_shift
    h = jnp.maximum(h, 0.0)
    y = lax.conv_general_dilated(h, model.w_dec, (1, 1), "SAME",
                                 dimension_numbers=dn) + model.b_dec
    return jnp.transpose(y, (0, 3, 1, 2))


if __name__ == "__main__":
    B, C, H, W = 2, 4, 16, 16
    key = jax.random.PRNGKey(0)
    x = jax.random.normal(key, (B, C, H, W), jnp.float32)

    model = EncoderDecoderPallas(in_ch=C, hidden=8, classes=3, seed=0)
    out = jax.block_until_ready(model.forward(x))
    assert out.shape == (B, 3, H, W), out.shape

    ref = jax.block_until_ready(_ref_forward(model, x))
    np.testing.assert_allclose(np.asarray(out), np.asarray(ref),
                               rtol=1e-4, atol=1e-4)
    print("KERNEL_OK")
</pallas_src>

<mosaic_0001>
module attributes {stable_mosaic.version = 11 : i64} {
  func.func @_encdec_kernel(%arg0: i32, %arg1: memref<4x512xf32, #tpu.memory_space<vmem>>, %arg2: memref<8x36xf32, #tpu.memory_space<vmem>>, %arg3: memref<3x72xf32, #tpu.memory_space<vmem>>, %arg4: memref<8x1xf32, #tpu.memory_space<vmem>>, %arg5: memref<3x1xf32, #tpu.memory_space<vmem>>, %arg6: memref<9x512xf32, #tpu.memory_space<vmem>>, %arg7: memref<3x512xf32, #tpu.memory_space<vmem>>) attributes {dimension_semantics = [#tpu.dimension_semantics<parallel>], iteration_bounds = array<i64: 1>, scalar_prefetch = 0 : i64, scratch_operands = 0 : i64, tpu.core_type = #tpu.core_type<tc>, window_params = [{transform_indices = @transform_0, window_bounds = array<i64: 4, 512>}, {pipeline_mode = #tpu.pipeline_mode<synchronous>, transform_indices = @transform_1, window_bounds = array<i64: 8, 36>}, {pipeline_mode = #tpu.pipeline_mode<synchronous>, transform_indices = @transform_2, window_bounds = array<i64: 3, 72>}, {pipeline_mode = #tpu.pipeline_mode<synchronous>, transform_indices = @transform_3, window_bounds = array<i64: 8, 1>}, {pipeline_mode = #tpu.pipeline_mode<synchronous>, transform_indices = @transform_4, window_bounds = array<i64: 3, 1>}, {pipeline_mode = #tpu.pipeline_mode<synchronous>, transform_indices = @transform_5, window_bounds = array<i64: 9, 512>}, {transform_indices = @transform_6, window_bounds = array<i64: 3, 512>}]} {
    %c0 = arith.constant 0 : index
    %c0_0 = arith.constant 0 : index
    %0 = vector.load %arg6[%c0, %c0_0] : memref<9x512xf32, #tpu.memory_space<vmem>>, vector<9x512xf32>
    %c0_1 = arith.constant 0 : index
    %c0_2 = arith.constant 0 : index
    %1 = vector.load %arg1[%c0_1, %c0_2] : memref<4x512xf32, #tpu.memory_space<vmem>>, vector<4x512xf32>
    %c0_3 = arith.constant 0 : index
    %c0_4 = arith.constant 0 : index
    %2 = vector.load %arg2[%c0_3, %c0_4] : memref<8x36xf32, #tpu.memory_space<vmem>>, vector<8x36xf32>
    %c17_i32 = arith.constant 17 : i32
    %3 = tpu.dynamic_rotate %1 by %c17_i32 dim 1 : vector<4x512xf32>, i32 -> vector<4x512xf32>
    %4 = vector.extract_strided_slice %0 {offsets = [0, 0], sizes = [1, 512], strides = [1, 1]} : vector<9x512xf32> to vector<1x512xf32>
    %5 = vector.broadcast %4 : vector<1x512xf32> to vector<4x512xf32>
    %6 = arith.mulf %3, %5 : vector<4x512xf32>
    %c16_i32 = arith.constant 16 : i32
    %7 = tpu.dynamic_rotate %1 by %c16_i32 dim 1 : vector<4x512xf32>, i32 -> vector<4x512xf32>
    %8 = vector.extract_strided_slice %0 {offsets = [1, 0], sizes = [1, 512], strides = [1, 1]} : vector<9x512xf32> to vector<1x512xf32>
    %9 = vector.broadcast %8 : vector<1x512xf32> to vector<4x512xf32>
    %10 = arith.mulf %7, %9 : vector<4x512xf32>
    %c15_i32 = arith.constant 15 : i32
    %11 = tpu.dynamic_rotate %1 by %c15_i32 dim 1 : vector<4x512xf32>, i32 -> vector<4x512xf32>
    %12 = vector.extract_strided_slice %0 {offsets = [2, 0], sizes = [1, 512], strides = [1, 1]} : vector<9x512xf32> to vector<1x512xf32>
    %13 = vector.broadcast %12 : vector<1x512xf32> to vector<4x512xf32>
    %14 = arith.mulf %11, %13 : vector<4x512xf32>
    %c1_i32 = arith.constant 1 : i32
    %15 = tpu.dynamic_rotate %1 by %c1_i32 dim 1 : vector<4x512xf32>, i32 -> vector<4x512xf32>
    %16 = vector.extract_strided_slice %0 {offsets = [3, 0], sizes = [1, 512], strides = [1, 1]} : vector<9x512xf32> to vector<1x512xf32>
    %17 = vector.broadcast %16 : vector<1x512xf32> to vector<4x512xf32>
    %18 = arith.mulf %15, %17 : vector<4x512xf32>
    %c511_i32 = arith.constant 511 : i32
    %19 = tpu.dynamic_rotate %1 by %c511_i32 dim 1 : vector<4x512xf32>, i32 -> vector<4x512xf32>
    %20 = vector.extract_strided_slice %0 {offsets = [5, 0], sizes = [1, 512], strides = [1, 1]} : vector<9x512xf32> to vector<1x512xf32>
    %21 = vector.broadcast %20 : vector<1x512xf32> to vector<4x512xf32>
    %22 = arith.mulf %19, %21 : vector<4x512xf32>
    %c497_i32 = arith.constant 497 : i32
    %23 = tpu.dynamic_rotate %1 by %c497_i32 dim 1 : vector<4x512xf32>, i32 -> vector<4x512xf32>
    %24 = vector.extract_strided_slice %0 {offsets = [6, 0], sizes = [1, 512], strides = [1, 1]} : vector<9x512xf32> to vector<1x512xf32>
    %25 = vector.broadcast %24 : vector<1x512xf32> to vector<4x512xf32>
    %26 = arith.mulf %23, %25 : vector<4x512xf32>
    %c496_i32 = arith.constant 496 : i32
    %27 = tpu.dynamic_rotate %1 by %c496_i32 dim 1 : vector<4x512xf32>, i32 -> vector<4x512xf32>
    %28 = vector.extract_strided_slice %0 {offsets = [7, 0], sizes = [1, 512], strides = [1, 1]} : vector<9x512xf32> to vector<1x512xf32>
    %29 = vector.broadcast %28 : vector<1x512xf32> to vector<4x512xf32>
    %30 = arith.mulf %27, %29 : vector<4x512xf32>
    %c495_i32 = arith.constant 495 : i32
    %31 = tpu.dynamic_rotate %1 by %c495_i32 dim 1 : vector<4x512xf32>, i32 -> vector<4x512xf32>
    %32 = vector.extract_strided_slice %0 {offsets = [8, 0], sizes = [1, 512], strides = [1, 1]} : vector<9x512xf32> to vector<1x512xf32>
    %33 = vector.broadcast %32 : vector<1x512xf32> to vector<4x512xf32>
    %34 = arith.mulf %31, %33 : vector<4x512xf32>
    %35 = tpu.concatenate %6, %10, %14, %18, %1, %22, %26, %30, %34 in 0 : vector<4x512xf32>, vector<4x512xf32>, vector<4x512xf32>, vector<4x512xf32>, vector<4x512xf32>, vector<4x512xf32>, vector<4x512xf32>, vector<4x512xf32>, vector<4x512xf32> -> vector<36x512xf32>
    %cst = arith.constant dense<0.000000e+00> : vector<8x512xf32>
    %36 = tpu.matmul %2, %35, %cst {dimension_numbers = #tpu.dot_dimension_numbers<[1], [0], [0], [1], [0, 0, 1, 1], [], []>} : vector<8x36xf32>, vector<36x512xf32>, vector<8x512xf32> -> vector<8x512xf32>
    %c0_5 = arith.constant 0 : index
    %c0_6 = arith.constant 0 : index
    %37 = vector.load %arg4[%c0_5, %c0_6] : memref<8x1xf32, #tpu.memory_space<vmem>>, vector<8x1xf32>
    %38 = vector.broadcast %37 : vector<8x1xf32> to vector<8x512xf32>
    %39 = arith.addf %36, %38 : vector<8x512xf32>
    %cst_7 = arith.constant 0.000000e+00 : f32
    %40 = vector.broadcast %cst_7 : f32 to vector<8x512xf32>
    %41 = arith.maximumf %39, %40 : vector<8x512xf32>
    %c0_8 = arith.constant 0 : index
    %c0_9 = arith.constant 0 : index
    %42 = vector.load %arg3[%c0_8, %c0_9] : memref<3x72xf32, #tpu.memory_space<vmem>>, vector<3x72xf32>
    %c17_i32_10 = arith.constant 17 : i32
    %43 = tpu.dynamic_rotate %41 by %c17_i32_10 dim 1 : vector<8x512xf32>, i32 -> vector<8x512xf32>
    %44 = vector.extract_strided_slice %0 {offsets = [0, 0], sizes = [1, 512], strides = [1, 1]} : vector<9x512xf32> to vector<1x512xf32>
    %45 = vector.broadcast %44 : vector<1x512xf32> to vector<8x512xf32>
    %46 = arith.mulf %43, %45 : vector<8x512xf32>
    %c16_i32_11 = arith.constant 16 : i32
    %47 = tpu.dynamic_rotate %41 by %c16_i32_11 dim 1 : vector<8x512xf32>, i32 -> vector<8x512xf32>
    %48 = vector.extract_strided_slice %0 {offsets = [1, 0], sizes = [1, 512], strides = [1, 1]} : vector<9x512xf32> to vector<1x512xf32>
    %49 = vector.broadcast %48 : vector<1x512xf32> to vector<8x512xf32>
    %50 = arith.mulf %47, %49 : vector<8x512xf32>
    %c15_i32_12 = arith.constant 15 : i32
    %51 = tpu.dynamic_rotate %41 by %c15_i32_12 dim 1 : vector<8x512xf32>, i32 -> vector<8x512xf32>
    %52 = vector.extract_strided_slice %0 {offsets = [2, 0], sizes = [1, 512], strides = [1, 1]} : vector<9x512xf32> to vector<1x512xf32>
    %53 = vector.broadcast %52 : vector<1x512xf32> to vector<8x512xf32>
    %54 = arith.mulf %51, %53 : vector<8x512xf32>
    %c1_i32_13 = arith.constant 1 : i32
    %55 = tpu.dynamic_rotate %41 by %c1_i32_13 dim 1 : vector<8x512xf32>, i32 -> vector<8x512xf32>
    %56 = vector.extract_strided_slice %0 {offsets = [3, 0], sizes = [1, 512], strides = [1, 1]} : vector<9x512xf32> to vector<1x512xf32>
    %57 = vector.broadcast %56 : vector<1x512xf32> to vector<8x512xf32>
    %58 = arith.mulf %55, %57 : vector<8x512xf32>
    %c511_i32_14 = arith.constant 511 : i32
    %59 = tpu.dynamic_rotate %41 by %c511_i32_14 dim 1 : vector<8x512xf32>, i32 -> vector<8x512xf32>
    %60 = vector.extract_strided_slice %0 {offsets = [5, 0], sizes = [1, 512], strides = [1, 1]} : vector<9x512xf32> to vector<1x512xf32>
    %61 = vector.broadcast %60 : vector<1x512xf32> to vector<8x512xf32>
    %62 = arith.mulf %59, %61 : vector<8x512xf32>
    %c497_i32_15 = arith.constant 497 : i32
    %63 = tpu.dynamic_rotate %41 by %c497_i32_15 dim 1 : vector<8x512xf32>, i32 -> vector<8x512xf32>
    %64 = vector.extract_strided_slice %0 {offsets = [6, 0], sizes = [1, 512], strides = [1, 1]} : vector<9x512xf32> to vector<1x512xf32>
    %65 = vector.broadcast %64 : vector<1x512xf32> to vector<8x512xf32>
    %66 = arith.mulf %63, %65 : vector<8x512xf32>
    %c496_i32_16 = arith.constant 496 : i32
    %67 = tpu.dynamic_rotate %41 by %c496_i32_16 dim 1 : vector<8x512xf32>, i32 -> vector<8x512xf32>
    %68 = vector.extract_strided_slice %0 {offsets = [7, 0], sizes = [1, 512], strides = [1, 1]} : vector<9x512xf32> to vector<1x512xf32>
    %69 = vector.broadcast %68 : vector<1x512xf32> to vector<8x512xf32>
    %70 = arith.mulf %67, %69 : vector<8x512xf32>
    %c495_i32_17 = arith.constant 495 : i32
    %71 = tpu.dynamic_rotate %41 by %c495_i32_17 dim 1 : vector<8x512xf32>, i32 -> vector<8x512xf32>
    %72 = vector.extract_strided_slice %0 {offsets = [8, 0], sizes = [1, 512], strides = [1, 1]} : vector<9x512xf32> to vector<1x512xf32>
    %73 = vector.broadcast %72 : vector<1x512xf32> to vector<8x512xf32>
    %74 = arith.mulf %71, %73 : vector<8x512xf32>
    %75 = tpu.concatenate %46, %50, %54, %58, %41, %62, %66, %70, %74 in 0 : vector<8x512xf32>, vector<8x512xf32>, vector<8x512xf32>, vector<8x512xf32>, vector<8x512xf32>, vector<8x512xf32>, vector<8x512xf32>, vector<8x512xf32>, vector<8x512xf32> -> vector<72x512xf32>
    %cst_18 = arith.constant dense<0.000000e+00> : vector<3x512xf32>
    %76 = tpu.matmul %42, %75, %cst_18 {dimension_numbers = #tpu.dot_dimension_numbers<[1], [0], [0], [1], [0, 0, 1, 1], [], []>} : vector<3x72xf32>, vector<72x512xf32>, vector<3x512xf32> -> vector<3x512xf32>
    %c0_19 = arith.constant 0 : index
    %c0_20 = arith.constant 0 : index
    %77 = vector.load %arg5[%c0_19, %c0_20] : memref<3x1xf32, #tpu.memory_space<vmem>>, vector<3x1xf32>
    %78 = vector.broadcast %77 : vector<3x1xf32> to vector<3x512xf32>
    %79 = arith.addf %76, %78 : vector<3x512xf32>
    %c0_21 = arith.constant 0 : index
    %c0_22 = arith.constant 0 : index
    %80 = vector.load %arg7[%c0_21, %c0_22] : memref<3x512xf32, #tpu.memory_space<vmem>>, vector<3x512xf32>
    tpu.vector_store %arg7[%c0_21, %c0_22], %79 {strides = array<i32>} : memref<3x512xf32, #tpu.memory_space<vmem>>, vector<3x512xf32>,
    return
  }
  func.func @transform_0(%arg0: i32) -> (i32, i32) {
    %c0_i32 = arith.constant 0 : i32
    %c0_i32_0 = arith.constant 0 : i32
    return %c0_i32, %arg0 : i32, i32
  }
  func.func @transform_1(%arg0: i32) -> (i32, i32) {
    %c0_i32 = arith.constant 0 : i32
    %c0_i32_0 = arith.constant 0 : i32
    %c0_i32_1 = arith.constant 0 : i32
    return %c0_i32, %c0_i32_0 : i32, i32
  }
  func.func @transform_2(%arg0: i32) -> (i32, i32) {
    %c0_i32 = arith.constant 0 : i32
    %c0_i32_0 = arith.constant 0 : i32
    %c0_i32_1 = arith.constant 0 : i32
    return %c0_i32, %c0_i32_0 : i32, i32
  }
  func.func @transform_3(%arg0: i32) -> (i32, i32) {
    %c0_i32 = arith.constant 0 : i32
    %c0_i32_0 = arith.constant 0 : i32
    %c0_i32_1 = arith.constant 0 : i32
    return %c0_i32, %c0_i32_0 : i32, i32
  }
  func.func @transform_4(%arg0: i32) -> (i32, i32) {
    %c0_i32 = arith.constant 0 : i32
    %c0_i32_0 = arith.constant 0 : i32
    %c0_i32_1 = arith.constant 0 : i32
    return %c0_i32, %c0_i32_0 : i32, i32
  }
  func.func @transform_5(%arg0: i32) -> (i32, i32) {
    %c0_i32 = arith.constant 0 : i32
    %c0_i32_0 = arith.constant 0 : i32
    %c0_i32_1 = arith.constant 0 : i32
    return %c0_i32, %c0_i32_0 : i32, i32
  }
  func.func @transform_6(%arg0: i32) -> (i32, i32) {
    %c0_i32 = arith.constant 0 : i32
    %c0_i32_0 = arith.constant 0 : i32
    return %c0_i32, %arg0 : i32, i32
  }
}

</mosaic_0001>

<llo_original>
// kernel: encdec_fused.1
$region0: #{encdec_fused.1}
  #allocation0 [shape = 'u32[]', space=smem, size = 0x4, offset = 0x4, fixed_abs, tag = 'smem constant byte address 0x4 - core index']
  #allocation1 [shape = 'u32[144,128]{1,0:T(1,128)}', space=vmem, size = 0x12000, scoped, tag = 'internal scratch']
  %s0 = inlined_call_operand.hbm [shape: f32[4,512], index: 0, kind: input, shape index: {}]
  %s1 = inlined_call_operand.vmem [shape: f32[8,36], index: 1, kind: input, shape index: {}]
  %s2 = inlined_call_operand.vmem [shape: f32[3,72], index: 2, kind: input, shape index: {}]
  %s3 = inlined_call_operand.vmem [shape: f32[8,1], index: 3, kind: input, shape index: {}]
  %s4 = inlined_call_operand.vmem [shape: f32[3,1], index: 4, kind: input, shape index: {}]
  %s5 = inlined_call_operand.hbm [shape: f32[9,512], index: 5, kind: input, shape index: {}]
  %s6 = inlined_call_operand.hbm [shape: f32[3,512], index: 6, kind: output, shape index: {}]
  %s7 = sld [smem:[#allocation0]]
  $region42: #{encdec_fused.1} parent=0
    _
  %s9 = ssub.s32 1, %s7
  %s10 = scalar_select 0, %s9, %s7
  $region1: #{encdec_fused.1} parent=0
    #allocation2 [shape = 'u8[8192]{0}', space=vmem, size = 0x2000, scoped, tag = 'input window, operand 0, single buffered']
    #allocation3 [shape = 's32[1]{0}', space=sflag, size = 0x4, scoped, tag = 'scoped memory for encdec_fused.1']
    #allocation4 [shape = 's32[1]{0}', space=sflag, size = 0x4, scoped, tag = 'scoped memory for encdec_fused.1']
    #allocation5 [shape = 'u8[32768]{0}', space=vmem, size = 0x8000, scoped, tag = 'input window, operand 5, single buffered']
    #allocation6 [shape = 's32[1]{0}', space=sflag, size = 0x4, scoped, tag = 'scoped memory for encdec_fused.1']
    #allocation7 [shape = 'u8[8192]{0}', space=vmem, size = 0x2000, scoped, tag = 'output window, operand 0, single buffered']
    %11 = vsyncpa [#allocation3], 0
    %12 = vsyncpa [#allocation6], 0
    %13 = vsyncpa [#allocation4], 0
    // Predicated region
    $region2: #{encdec_fused.1} parent=1 // pred_check
      _
    $region3: #{encdec_fused.1} parent=1 // pred_check_branch
      %15 = sbr.rel (0) target = $region5
    $region4: #{encdec_fused.1} parent=1 // pred_region
      %s17 = ssub.s32 256, 256
      %18 = vsyncadd [#allocation3], %s17
      %s20 = sshll.u32 [#allocation2], 4
      %s21 = int_to_ptr.vmem [resolvable:$true] %s20
      %23 = dma.hbm_to_vmem [thread:$0]  %s0, 256, %s21, [#allocation3]
    $region5: #{encdec_fused.1} parent=1 // pred_fallthru
      _
    // Predicated region
    $region6: #{encdec_fused.1} parent=1 // pred_check
      _
    $region7: #{encdec_fused.1} parent=1 // pred_check_branch
      %25 = sbr.rel (0) target = $region9
    $region8: #{encdec_fused.1} parent=1 // pred_region
      _
    $region9: #{encdec_fused.1} parent=1 // pred_fallthru
      _
    // Predicated region
    $region10: #{encdec_fused.1} parent=1 // pred_check
      _
    $region11: #{encdec_fused.1} parent=1 // pred_check_branch
      %27 = sbr.rel (0) target = $region13
    $region12: #{encdec_fused.1} parent=1 // pred_region
      _
    $region13: #{encdec_fused.1} parent=1 // pred_fallthru
      _
    // Predicated region
    $region14: #{encdec_fused.1} parent=1 // pred_check
      _
    $region15: #{encdec_fused.1} parent=1 // pred_check_branch
      %29 = sbr.rel (0) target = $region17
    $region16: #{encdec_fused.1} parent=1 // pred_region
      _
    $region17: #{encdec_fused.1} parent=1 // pred_fallthru
      _
    // Predicated region
    $region18: #{encdec_fused.1} parent=1 // pred_check
      _
    $region19: #{encdec_fused.1} parent=1 // pred_check_branch
      %31 = sbr.rel (0) target = $region21
    $region20: #{encdec_fused.1} parent=1 // pred_region
      _
    $region21: #{encdec_fused.1} parent=1 // pred_fallthru
      _
    // Predicated region
    $region22: #{encdec_fused.1} parent=1 // pred_check
      _
    $region23: #{encdec_fused.1} parent=1 // pred_check_branch
      %33 = sbr.rel (0) target = $region25
    $region24: #{encdec_fused.1} parent=1 // pred_region
      %s35 = ssub.s32 1024, 1024
      %36 = vsyncadd [#allocation6], %s35
      %s37 = sshll.u32 [#allocation5], 4
      %s38 = int_to_ptr.vmem [resolvable:$true] %s37
      %43 = dma.hbm_to_vmem [thread:$0]  %s5, 1024, %s38, [#allocation6], 512, 512, 32
    $region25: #{encdec_fused.1} parent=1 // pred_fallthru
      _
    // Predicated region
    $region26: #{encdec_fused.1} parent=1 // pred_check
      _
    $region27: #{encdec_fused.1} parent=1 // pred_check_branch
      %45 = sbr.rel (0) target = $region29
    $region28: #{encdec_fused.1} parent=1 // pred_region
      %46 = dma.done [#allocation3], 256
    $region29: #{encdec_fused.1} parent=1 // pred_fallthru
      _
    // Predicated region
    $region30: #{encdec_fused.1} parent=1 // pred_check
      _
    $region31: #{encdec_fused.1} parent=1 // pred_check_branch
      %48 = sbr.rel (0) target = $region33
    $region32: #{encdec_fused.1} parent=1 // pred_region
      %49 = dma.done [#allocation6], 1024
    $region33: #{encdec_fused.1} parent=1 // pred_fallthru
      _
    %v50 = vld [vmem:[#allocation5] sm:$0xff]
    %v51 = vld [vmem:[#allocation5 + $0x8] sm:$0xff]
    %v52 = vld [vmem:[#allocation5 + $0x10] sm:$0xff]
    %v53 = vld [vmem:[#allocation5 + $0x18] sm:$0xff]
    %v54 = vld [vmem:[#allocation5 + $0x20] sm:$0x1]
    %v55 = vld [vmem:[#allocation5 + $0x28] sm:$0x1]
    %v56 = vld [vmem:[#allocation5 + $0x30] sm:$0x1]
    %v57 = vld [vmem:[#allocation5 + $0x38] sm:$0x1]
    %v58 = vld [vmem:[#allocation2] sm:$0xff]
    %v59 = vld [vmem:[#allocation2 + $0x8] sm:$0xff]
    %v60 = vld [vmem:[%s1] sm:$0xff]
    %v63 = vcombine.high %v58, %v58
    %v64 = vcombine.high %v59, %v59
    %67 = vrot.lane.b32.xlu0 %v58, 17
    %v68 = vpop.permute.xlu0 %67
    %69 = vrot.lane.b32.xlu0 %v63, 17
    %v70 = vpop.permute.xlu0 %69
    %71 = vrot.lane.b32.xlu0 %v59, 17
    %v72 = vpop.permute.xlu0 %71
    %73 = vrot.lane.b32.xlu0 %v64, 17
    %v74 = vpop.permute.xlu0 %73
    %v75 = vlaneseq
    %v76 = vand.u32 %v75, 127
    %vm77 = vcmp.lt.s32.totalorder %v76, 17
    %v78 = vsel %vm77, %v72, %v74
    %v79 = vsel %vm77, %v70, %v72
    %v80 = vsel %vm77, %v68, %v70
    %v81 = vsel %vm77, %v74, %v68
    %v82 = vlaneseq
    %v83 = vshrl.u32 %v82, 7
    %v84 = vsub.s32 0, %v83
    %v85 = vrot.slane %v50, %v84
    %v86 = vlaneseq
    %v87 = vshrl.u32 %v86, 7
    %v88 = vsub.s32 0, %v87
    %v89 = vrot.slane %v51, %v88
    %v90 = vlaneseq
    %v91 = vshrl.u32 %v90, 7
    %v92 = vsub.s32 0, %v91
    %v93 = vrot.slane %v52, %v92
    %v94 = vlaneseq
    %v95 = vshrl.u32 %v94, 7
    %v96 = vsub.s32 0, %v95
    %v97 = vrot.slane %v53, %v96
    %v98 = vmul.f32 %v81, %v85
    %v99 = vmul.f32 %v80, %v89
    %v100 = vmul.f32 %v79, %v93
    %v101 = vmul.f32 %v78, %v97
    %102 = vrot.lane.b32.xlu0 %v58, 16
    %v103 = vpop.permute.xlu0 %102
    %104 = vrot.lane.b32.xlu0 %v63, 16
    %v105 = vpop.permute.xlu0 %104
    %106 = vrot.lane.b32.xlu0 %v59, 16
    %v107 = vpop.permute.xlu0 %106
    %108 = vrot.lane.b32.xlu0 %v64, 16
    %v109 = vpop.permute.xlu0 %108
    %vm110 = vcmp.lt.s32.totalorder %v76, 16
    %v111 = vsel %vm110, %v107, %v109
    %v112 = vsel %vm110, %v105, %v107
    %v113 = vsel %vm110, %v103, %v105
    %v114 = vsel %vm110, %v109, %v103
    %v115 = vlaneseq
    %v116 = vshrl.u32 %v115, 7
    %v117 = vsub.s32 1, %v116
    %v118 = vrot.slane %v50, %v117
    %v119 = vlaneseq
    %v120 = vshrl.u32 %v119, 7
    %v121 = vsub.s32 1, %v120
    %v122 = vrot.slane %v51, %v121
    %v123 = vlaneseq
    %v124 = vshrl.u32 %v123, 7
    %v125 = vsub.s32 1, %v124
    %v126 = vrot.slane %v52, %v125
    %v127 = vlaneseq
    %v128 = vshrl.u32 %v127, 7
    %v129 = vsub.s32 1, %v128
    %v130 = vrot.slane %v53, %v129
    %v131 = vmul.f32 %v114, %v118
    %v132 = vmul.f32 %v113, %v122
    %v133 = vmul.f32 %v112, %v126
    %v134 = vmul.f32 %v111, %v130
    %135 = vrot.lane.b32.xlu0 %v58, 15
    %v136 = vpop.permute.xlu0 %135
    %137 = vrot.lane.b32.xlu0 %v63, 15
    %v138 = vpop.permute.xlu0 %137
    %139 = vrot.lane.b32.xlu0 %v59, 15
    %v140 = vpop.permute.xlu0 %139
    %141 = vrot.lane.b32.xlu0 %v64, 15
    %v142 = vpop.permute.xlu0 %141
    %vm143 = vcmp.lt.s32.totalorder %v76, 15
    %v144 = vsel %vm143, %v140, %v142
    %v145 = vsel %vm143, %v138, %v140
    %v146 = vsel %vm143, %v136, %v138
    %v147 = vsel %vm143, %v142, %v136
    %v148 = vlaneseq
    %v149 = vshrl.u32 %v148, 7
    %v150 = vsub.s32 2, %v149
    %v151 = vrot.slane %v50, %v150
    %v152 = vlaneseq
    %v153 = vshrl.u32 %v152, 7
    %v154 = vsub.s32 2, %v153
    %v155 = vrot.slane %v51, %v154
    %v156 = vlaneseq
    %v157 = vshrl.u32 %v156, 7
    %v158 = vsub.s32 2, %v157
    %v159 = vrot.slane %v52, %v158
    %v160 = vlaneseq
    %v161 = vshrl.u32 %v160, 7
    %v162 = vsub.s32 2, %v161
    %v163 = vrot.slane %v53, %v162
    %v164 = vmul.f32 %v147, %v151
    %v165 = vmul.f32 %v146, %v155
    %v166 = vmul.f32 %v145, %v159
    %v167 = vmul.f32 %v144, %v163
    %168 = vrot.lane.b32.xlu0 %v58, 1
    %v169 = vpop.permute.xlu0 %168
    %170 = vrot.lane.b32.xlu0 %v63, 1
    %v171 = vpop.permute.xlu0 %170
    %172 = vrot.lane.b32.xlu0 %v59, 1
    %v173 = vpop.permute.xlu0 %172
    %174 = vrot.lane.b32.xlu0 %v64, 1
    %v175 = vpop.permute.xlu0 %174
    %vm176 = vcmp.lt.s32.totalorder %v76, 1
    %v177 = vsel %vm176, %v173, %v175
    %v178 = vsel %vm176, %v171, %v173
    %v179 = vsel %vm176, %v169, %v171
    %v180 = vsel %vm176, %v175, %v169
    %v181 = vlaneseq
    %v182 = vshrl.u32 %v181, 7
    %v183 = vsub.s32 3, %v182
    %v184 = vrot.slane %v50, %v183
    %v185 = vlaneseq
    %v186 = vshrl.u32 %v185, 7
    %v187 = vsub.s32 3, %v186
    %v188 = vrot.slane %v51, %v187
    %v189 = vlaneseq
    %v190 = vshrl.u32 %v189, 7
    %v191 = vsub.s32 3, %v190
    %v192 = vrot.slane %v52, %v191
    %v193 = vlaneseq
    %v194 = vshrl.u32 %v193, 7
    %v195 = vsub.s32 3, %v194
    %v196 = vrot.slane %v53, %v195
    %v197 = vmul.f32 %v180, %v184
    %v198 = vmul.f32 %v179, %v188
    %v199 = vmul.f32 %v178, %v192
    %v200 = vmul.f32 %v177, %v196
    %201 = vrot.lane.b32.xlu0 %v58, 127
    %v202 = vpop.permute.xlu0 %201
    %203 = vrot.lane.b32.xlu0 %v63, 127
    %v204 = vpop.permute.xlu0 %203
    %205 = vrot.lane.b32.xlu0 %v59, 127
    %v206 = vpop.permute.xlu0 %205
    %207 = vrot.lane.b32.xlu0 %v64, 127
    %v208 = vpop.permute.xlu0 %207
    %vm209 = vcmp.lt.s32.totalorder %v76, 127
    %v210 = vsel %vm209, %v206, %v208
    %v211 = vsel %vm209, %v204, %v206
    %v212 = vsel %vm209, %v202, %v204
    %v213 = vsel %vm209, %v208, %v202
    %v214 = vlaneseq
    %v215 = vshrl.u32 %v214, 7
    %v216 = vsub.s32 5, %v215
    %v217 = vrot.slane %v50, %v216
    %v218 = vlaneseq
    %v219 = vshrl.u32 %v218, 7
    %v220 = vsub.s32 5, %v219
    %v221 = vrot.slane %v51, %v220
    %v222 = vlaneseq
    %v223 = vshrl.u32 %v222, 7
    %v224 = vsub.s32 5, %v223
    %v225 = vrot.slane %v52, %v224
    %v226 = vlaneseq
    %v227 = vshrl.u32 %v226, 7
    %v228 = vsub.s32 5, %v227
    %v229 = vrot.slane %v53, %v228
    %v230 = vmul.f32 %v212, %v217
    %v231 = vmul.f32 %v211, %v221
    %v232 = vmul.f32 %v210, %v225
    %v233 = vmul.f32 %v213, %v229
    %234 = vrot.lane.b32.xlu0 %v58, 113
    %v235 = vpop.permute.xlu0 %234
    %236 = vrot.lane.b32.xlu0 %v63, 113
    %v237 = vpop.permute.xlu0 %236
    %238 = vrot.lane.b32.xlu0 %v59, 113
    %v239 = vpop.permute.xlu0 %238
    %240 = vrot.lane.b32.xlu0 %v64, 113
    %v241 = vpop.permute.xlu0 %240
    %vm242 = vcmp.lt.s32.totalorder %v76, 113
    %v243 = vsel %vm242, %v239, %v241
    %v244 = vsel %vm242, %v237, %v239
    %v245 = vsel %vm242, %v235, %v237
    %v246 = vsel %vm242, %v241, %v235
    %v247 = vlaneseq
    %v248 = vshrl.u32 %v247, 7
    %v249 = vsub.s32 6, %v248
    %v250 = vrot.slane %v50, %v249
    %v251 = vlaneseq
    %v252 = vshrl.u32 %v251, 7
    %v253 = vsub.s32 6, %v252
    %v254 = vrot.slane %v51, %v253
    %v255 = vlaneseq
    %v256 = vshrl.u32 %v255, 7
    %v257 = vsub.s32 6, %v256
    %v258 = vrot.slane %v52, %v257
    %v259 = vlaneseq
    %v260 = vshrl.u32 %v259, 7
    %v261 = vsub.s32 6, %v260
    %v262 = vrot.slane %v53, %v261
    %v263 = vmul.f32 %v245, %v250
    %v264 = vmul.f32 %v244, %v254
    %v265 = vmul.f32 %v243, %v258
    %v266 = vmul.f32 %v246, %v262
    %267 = vrot.lane.b32.xlu0 %v58, 112
    %v268 = vpop.permute.xlu0 %267
    %269 = vrot.lane.b32.xlu0 %v63, 112
    %v270 = vpop.permute.xlu0 %269
    %271 = vrot.lane.b32.xlu0 %v59, 112
    %v272 = vpop.permute.xlu0 %271
    %273 = vrot.lane.b32.xlu0 %v64, 112
    %v274 = vpop.permute.xlu0 %273
    %vm275 = vcmp.lt.s32.totalorder %v76, 112
    %v276 = vsel %vm275, %v272, %v274
    %v277 = vsel %vm275, %v270, %v272
    %v278 = vsel %vm275, %v268, %v270
    %v279 = vsel %vm275, %v274, %v268
    %v280 = vlaneseq
    %v281 = vshrl.u32 %v280, 7
    %v282 = vsub.s32 7, %v281
    %v283 = vrot.slane %v50, %v282
    %v284 = vlaneseq
    %v285 = vshrl.u32 %v284, 7
    %v286 = vsub.s32 7, %v285
    %v287 = vrot.slane %v51, %v286
    %v288 = vlaneseq
    %v289 = vshrl.u32 %v288, 7
    %v290 = vsub.s32 7, %v289
    %v291 = vrot.slane %v52, %v290
    %v292 = vlaneseq
    %v293 = vshrl.u32 %v292, 7
    %v294 = vsub.s32 7, %v293
    %v295 = vrot.slane %v53, %v294
    %v296 = vmul.f32 %v278, %v283
    %v297 = vmul.f32 %v277, %v287
    %v298 = vmul.f32 %v276, %v291
    %v299 = vmul.f32 %v279, %v295
    %300 = vrot.lane.b32.xlu0 %v58, 111
    %v301 = vpop.permute.xlu0 %300
    %302 = vrot.lane.b32.xlu0 %v63, 111
    %v303 = vpop.permute.xlu0 %302
    %304 = vrot.lane.b32.xlu0 %v59, 111
    %v305 = vpop.permute.xlu0 %304
    %306 = vrot.lane.b32.xlu0 %v64, 111
    %v307 = vpop.permute.xlu0 %306
    %vm308 = vcmp.lt.s32.totalorder %v76, 111
    %v309 = vsel %vm308, %v305, %v307
    %v310 = vsel %vm308, %v303, %v305
    %v311 = vsel %vm308, %v301, %v303
    %v312 = vsel %vm308, %v307, %v301
    %v313 = vlaneseq
    %v314 = vshrl.u32 %v313, 7
    %v315 = vsub.s32 0, %v314
    %v316 = vrot.slane %v54, %v315
    %v317 = vlaneseq
    %v318 = vshrl.u32 %v317, 7
    %v319 = vsub.s32 0, %v318
    %v320 = vrot.slane %v55, %v319
    %v321 = vlaneseq
    %v322 = vshrl.u32 %v321, 7
    %v323 = vsub.s32 0, %v322
    %v324 = vrot.slane %v56, %v323
    %v325 = vlaneseq
    %v326 = vshrl.u32 %v325, 7
    %v327 = vsub.s32 0, %v326
    %v328 = vrot.slane %v57, %v327
    %v329 = vmul.f32 %v311, %v316
    %v330 = vmul.f32 %v310, %v320
    %v331 = vmul.f32 %v309, %v324
    %v332 = vmul.f32 %v312, %v328
    %v337 = vrot.slane %v131, 4
    %v338 = vrot.slane %v132, 4
    %v339 = vrot.slane %v133, 4
    %v340 = vrot.slane %v134, 4
    %v349 = vrot.slane %v197, 4
    %v350 = vrot.slane %v198, 4
    %v351 = vrot.slane %v199, 4
    %v352 = vrot.slane %v200, 4
    %v361 = vrot.slane %v230, 4
    %v362 = vrot.slane %v231, 4
    %v363 = vrot.slane %v232, 4
    %v364 = vrot.slane %v233, 4
    %v373 = vrot.slane %v296, 4
    %v374 = vrot.slane %v297, 4
    %v375 = vrot.slane %v298, 4
    %v376 = vrot.slane %v299, 4
    %vm381 = vcmask 1043456
    %v382 = vsel %vm381, %v98, %v337
    %v383 = vsel %vm381, %v99, %v338
    %v384 = vsel %vm381, %v100, %v339
    %v385 = vsel %vm381, %v101, %v340
    %v386 = vsel %vm381, %v164, %v349
    %v387 = vsel %vm381, %v165, %v350
    %v388 = vsel %vm381, %v166, %v351
    %v389 = vsel %vm381, %v167, %v352
    %v390 = vsel %vm381, %v58, %v361
    %v391 = vsel %vm381, %v63, %v362
    %v392 = vsel %vm381, %v59, %v363
    %v393 = vsel %vm381, %v64, %v364
    %v394 = vsel %vm381, %v263, %v373
    %v395 = vsel %vm381, %v264, %v374
    %v396 = vsel %vm381, %v265, %v375
    %v397 = vsel %vm381, %v266, %v376
    %v398 = vld [vmem:[%s3] sm:$0xff]
    %400 = vset.pattern.permute.xlu0 0
    %401 = vperm.xlu0 %400, %v398
    %v402 = vpop.permute.xlu0 %401
    %vm404 = vcmask 293888
    %v406 = vsel %vm404, %v60, 0
    %v409 = vsel %vm381, %v329, 0
    %v412 = vsel %vm381, %v330, 0
    %v415 = vsel %vm381, %v331, 0
    %v418 = vsel %vm381, %v332, 0
    %420 = vmatprep.subr.mxu0 %v383
    %421 = vmatpush1.msra.mxu0 %v382
    %422 = vmatprep.subr.mxu0 %v387
    %423 = vmatpush1.msra.mxu0 %v386
    %424 = vmatprep.subr.mxu0 %v391
    %425 = vmatpush1.msra.mxu0 %v390
    %426 = vmatprep.subr.mxu0 %v395
    %427 = vmatpush1.msra.mxu0 %v394
    %428 = vmatprep.subr.mxu0 %v412
    %429 = vmatpush1.msra.mxu0 %v409
    %430 = vmatprep.subr.mxu0 0.0
    %431 = vmatpush1.msra.mxu0 0.0
    %432 = vmatprep.subr.mxu0 0.0
    %433 = vmatpush1.msra.mxu0 0.0
    %434 = vmatprep.subr.mxu0 0.0
    %435 = vmatpush1.msra.mxu0 0.0
    %436 = vmatprep.subr.mxu0 0.0
    %437 = vmatpush1.msra.mxu0 0.0
    %438 = vmatprep.subr.mxu0 0.0
    %439 = vmatpush1.msra.mxu0 0.0
    %440 = vmatprep.subr.mxu0 0.0
    %441 = vmatpush1.msra.mxu0 0.0
    %442 = vmatprep.subr.mxu0 0.0
    %443 = vmatpush1.msra.mxu0 0.0
    %444 = vmatprep.subr.mxu0 0.0
    %445 = vmatpush1.msra.mxu0 0.0
    %446 = vmatprep.subr.mxu0 0.0
    %447 = vmatpush1.msra.mxu0 0.0
    %448 = vmatprep.subr.mxu0 0.0
    %449 = vmatpush1.msra.mxu0 0.0
    %450 = vmatprep.subr.mxu0 0.0
    %451 = vmatpush1.msra.mxu0 0.0
    %452 = vmatprep.subr.mxu0 0.0
    %453 = vmatpush1.msra.mxu0 0.0
    %454 = vmatprep.subr.mxu0 0.0
    %455 = vmatpush1.msra.mxu0 0.0
    %456 = vmatprep.subr.mxu0 0.0
    %457 = vmatpush1.msra.mxu0 0.0
    %458 = vmatprep.subr.mxu0 0.0
    %459 = vmatpush1.msra.mxu0 0.0
    %460 = vmatprep.subr.mxu0 0.0
    %461 = vmatpush1.msra.mxu0 0.0
    %462 = vmatprep.subr.mxu0 0.0
    %463 = vmatpush1.msra.mxu0 0.0
    %464 = vmatprep.subr.mxu0 0.0
    %465 = vmatpush1.msra.mxu0 0.0
    %466 = vmatprep.subr.mxu0 0.0
    %467 = vmatpush1.msra.mxu0 0.0
    %468 = vmatprep.subr.mxu0 0.0
    %469 = vmatpush1.msra.mxu0 0.0
    %470 = vmatprep.subr.mxu0 0.0
    %471 = vmatpush1.msra.mxu0 0.0
    %472 = vmatprep.subr.mxu0 0.0
    %473 = vmatpush1.msra.mxu0 0.0
    %474 = vmatprep.subr.mxu0 0.0
    %475 = vmatpush1.msra.mxu0 0.0
    %476 = vmatprep.subr.mxu0 0.0
    %477 = vmatpush1.msra.mxu0 0.0
    %478 = vmatprep.subr.mxu0 0.0
    %479 = vmatpush1.msra.mxu0 0.0
    %480 = vmatprep.subr.mxu0 0.0
    %481 = vmatpush1.msra.mxu0 0.0
    %482 = vmatprep.subr.mxu0 0.0
    %483 = vmatpush1.msra.mxu0 0.0
    %484 = vmatprep.mubr.f32.mxu0 0.0
    %485 = vmatmul.mubr.f32.gmra.mrb[0].mxu0 %v406
    %v486 = vpop.f32.mrb[0].mxu0
    %v487 = vadd.f32 %v402, %v486
    %v488 = vpop.f32.mrb[0].mxu0
    %v489 = vadd.f32 %v402, %v488
    %490 = vdwg.mxu0
    %491 = vmatprep.subr.mxu0 %v385
    %492 = vmatpush1.msra.mxu0 %v384
    %493 = vmatprep.subr.mxu0 %v389
    %494 = vmatpush1.msra.mxu0 %v388
    %495 = vmatprep.subr.mxu0 %v393
    %496 = vmatpush1.msra.mxu0 %v392
    %497 = vmatprep.subr.mxu0 %v397
    %498 = vmatpush1.msra.mxu0 %v396
    %499 = vmatprep.subr.mxu0 %v418
    %500 = vmatpush1.msra.mxu0 %v415
    %501 = vmatprep.subr.mxu0 0.0
    %502 = vmatpush1.msra.mxu0 0.0
    %503 = vmatprep.subr.mxu0 0.0
    %504 = vmatpush1.msra.mxu0 0.0
    %505 = vmatprep.subr.mxu0 0.0
    %506 = vmatpush1.msra.mxu0 0.0
    %507 = vmatprep.subr.mxu0 0.0
    %508 = vmatpush1.msra.mxu0 0.0
    %509 = vmatprep.subr.mxu0 0.0
    %510 = vmatpush1.msra.mxu0 0.0
    %511 = vmatprep.subr.mxu0 0.0
    %512 = vmatpush1.msra.mxu0 0.0
    %513 = vmatprep.subr.mxu0 0.0
    %514 = vmatpush1.msra.mxu0 0.0
    %515 = vmatprep.subr.mxu0 0.0
    %516 = vmatpush1.msra.mxu0 0.0
    %517 = vmatprep.subr.mxu0 0.0
    %518 = vmatpush1.msra.mxu0 0.0
    %519 = vmatprep.subr.mxu0 0.0
    %520 = vmatpush1.msra.mxu0 0.0
    %521 = vmatprep.subr.mxu0 0.0
    %522 = vmatpush1.msra.mxu0 0.0
    %523 = vmatprep.subr.mxu0 0.0
    %524 = vmatpush1.msra.mxu0 0.0
    %525 = vmatprep.subr.mxu0 0.0
    %526 = vmatpush1.msra.mxu0 0.0
    %527 = vmatprep.subr.mxu0 0.0
    %528 = vmatpush1.msra.mxu0 0.0
    %529 = vmatprep.subr.mxu0 0.0
    %530 = vmatpush1.msra.mxu0 0.0
    %531 = vmatprep.subr.mxu0 0.0
    %532 = vmatpush1.msra.mxu0 0.0
    %533 = vmatprep.subr.mxu0 0.0
    %534 = vmatpush1.msra.mxu0 0.0
    %535 = vmatprep.subr.mxu0 0.0
    %536 = vmatpush1.msra.mxu0 0.0
    %537 = vmatprep.subr.mxu0 0.0
    %538 = vmatpush1.msra.mxu0 0.0
    %539 = vmatprep.subr.mxu0 0.0
    %540 = vmatpush1.msra.mxu0 0.0
    %541 = vmatprep.subr.mxu0 0.0
    %542 = vmatpush1.msra.mxu0 0.0
    %543 = vmatprep.subr.mxu0 0.0
    %544 = vmatpush1.msra.mxu0 0.0
    %545 = vmatprep.subr.mxu0 0.0
    %546 = vmatpush1.msra.mxu0 0.0
    %547 = vmatprep.subr.mxu0 0.0
    %548 = vmatpush1.msra.mxu0 0.0
    %549 = vmatprep.subr.mxu0 0.0
    %550 = vmatpush1.msra.mxu0 0.0
    %551 = vmatprep.subr.mxu0 0.0
    %552 = vmatpush1.msra.mxu0 0.0
    %553 = vmatprep.subr.mxu0 0.0
    %554 = vmatpush1.msra.mxu0 0.0
    %555 = vmatprep.mubr.f32.mxu0 0.0
    %556 = vmatmul.mubr.f32.gmra.mrb[0].mxu0 %v406
    %v557 = vpop.f32.mrb[0].mxu0
    %v558 = vadd.f32 %v402, %v557
    %v559 = vpop.f32.mrb[0].mxu0
    %v560 = vadd.f32 %v402, %v559
    %561 = vdwg.mxu0
    %v562 = vmax.f32 %v487, 0.0
    %v563 = vmax.f32 %v489, 0.0
    %v564 = vmax.f32 %v558, 0.0
    %v565 = vmax.f32 %v560, 0.0
    %v566 = vld [vmem:[%s2] sm:$0x7]
    %567 = vrot.lane.b32.xlu0 %v562, 17
    %v568 = vpop.permute.xlu0 %567
    %569 = vrot.lane.b32.xlu0 %v563, 17
    %v570 = vpop.permute.xlu0 %569
    %571 = vrot.lane.b32.xlu0 %v564, 17
    %v572 = vpop.permute.xlu0 %571
    %573 = vrot.lane.b32.xlu0 %v565, 17
    %v574 = vpop.permute.xlu0 %573
    %v575 = vsel %vm77, %v572, %v574
    %v576 = vsel %vm77, %v570, %v572
    %v577 = vsel %vm77, %v568, %v570
    %v578 = vsel %vm77, %v574, %v568
    %v579 = vmul.f32 %v578, %v85
    %v580 = vmul.f32 %v577, %v89
    %v581 = vmul.f32 %v576, %v93
    %v582 = vmul.f32 %v575, %v97
    %583 = vrot.lane.b32.xlu0 %v562, 16
    %v584 = vpop.permute.xlu0 %583
    %585 = vrot.lane.b32.xlu0 %v563, 16
    %v586 = vpop.permute.xlu0 %585
    %587 = vrot.lane.b32.xlu0 %v564, 16
    %v588 = vpop.permute.xlu0 %587
    %589 = vrot.lane.b32.xlu0 %v565, 16
    %v590 = vpop.permute.xlu0 %589
    %v591 = vsel %vm110, %v588, %v590
    %v592 = vsel %vm110, %v586, %v588
    %v593 = vsel %vm110, %v584, %v586
    %v594 = vsel %vm110, %v590, %v584
    %v595 = vmul.f32 %v594, %v118
    %v596 = vmul.f32 %v593, %v122
    %v597 = vmul.f32 %v592, %v126
    %v598 = vmul.f32 %v591, %v130
    %599 = vrot.lane.b32.xlu0 %v562, 15
    %v600 = vpop.permute.xlu0 %599
    %601 = vrot.lane.b32.xlu0 %v563, 15
    %v602 = vpop.permute.xlu0 %601
    %603 = vrot.lane.b32.xlu0 %v564, 15
    %v604 = vpop.permute.xlu0 %603
    %605 = vrot.lane.b32.xlu0 %v565, 15
    %v606 = vpop.permute.xlu0 %605
    %v607 = vsel %vm143, %v604, %v606
    %v608 = vsel %vm143, %v602, %v604
    %v609 = vsel %vm143, %v600, %v602
    %v610 = vsel %vm143, %v606, %v600
    %v611 = vmul.f32 %v610, %v151
    %v612 = vmul.f32 %v609, %v155
    %v613 = vmul.f32 %v608, %v159
    %v614 = vmul.f32 %v607, %v163
    %615 = vrot.lane.b32.xlu0 %v562, 1
    %v616 = vpop.permute.xlu0 %615
    %617 = vrot.lane.b32.xlu0 %v563, 1
    %v618 = vpop.permute.xlu0 %617
    %619 = vrot.lane.b32.xlu0 %v564, 1
    %v620 = vpop.permute.xlu0 %619
    %621 = vrot.lane.b32.xlu0 %v565, 1
    %v622 = vpop.permute.xlu0 %621
    %v623 = vsel %vm176, %v620, %v622
    %v624 = vsel %vm176, %v618, %v620
    %v625 = vsel %vm176, %v616, %v618
    %v626 = vsel %vm176, %v622, %v616
    %v627 = vmul.f32 %v626, %v184
    %v628 = vmul.f32 %v625, %v188
    %v629 = vmul.f32 %v624, %v192
    %v630 = vmul.f32 %v623, %v196
    %631 = vrot.lane.b32.xlu0 %v562, 127
    %v632 = vpop.permute.xlu0 %631
    %633 = vrot.lane.b32.xlu0 %v563, 127
    %v634 = vpop.permute.xlu0 %633
    %635 = vrot.lane.b32.xlu0 %v564, 127
    %v636 = vpop.permute.xlu0 %635
    %637 = vrot.lane.b32.xlu0 %v565, 127
    %v638 = vpop.permute.xlu0 %637
    %v639 = vsel %vm209, %v636, %v638
    %v640 = vsel %vm209, %v634, %v636
    %v641 = vsel %vm209, %v632, %v634
    %v642 = vsel %vm209, %v638, %v632
    %v643 = vmul.f32 %v641, %v217
    %v644 = vmul.f32 %v640, %v221
    %v645 = vmul.f32 %v639, %v225
    %v646 = vmul.f32 %v642, %v229
    %647 = vrot.lane.b32.xlu0 %v562, 113
    %v648 = vpop.permute.xlu0 %647
    %649 = vrot.lane.b32.xlu0 %v563, 113
    %v650 = vpop.permute.xlu0 %649
    %651 = vrot.lane.b32.xlu0 %v564, 113
    %v652 = vpop.permute.xlu0 %651
    %653 = vrot.lane.b32.xlu0 %v565, 113
    %v654 = vpop.permute.xlu0 %653
    %v655 = vsel %vm242, %v652, %v654
    %v656 = vsel %vm242, %v650, %v652
    %v657 = vsel %vm242, %v648, %v650
    %v658 = vsel %vm242, %v654, %v648
    %v659 = vmul.f32 %v657, %v250
    %v660 = vmul.f32 %v656, %v254
    %v661 = vmul.f32 %v655, %v258
    %v662 = vmul.f32 %v658, %v262
    %663 = vrot.lane.b32.xlu0 %v562, 112
    %v664 = vpop.permute.xlu0 %663
    %665 = vrot.lane.b32.xlu0 %v563, 112
    %v666 = vpop.permute.xlu0 %665
    %667 = vrot.lane.b32.xlu0 %v564, 112
    %v668 = vpop.permute.xlu0 %667
    %669 = vrot.lane.b32.xlu0 %v565, 112
    %v670 = vpop.permute.xlu0 %669
    %v671 = vsel %vm275, %v668, %v670
    %v672 = vsel %vm275, %v666, %v668
    %v673 = vsel %vm275, %v664, %v666
    %v674 = vsel %vm275, %v670, %v664
    %v675 = vmul.f32 %v673, %v283
    %v676 = vmul.f32 %v672, %v287
    %v677 = vmul.f32 %v671, %v291
    %v678 = vmul.f32 %v674, %v295
    %679 = vrot.lane.b32.xlu0 %v562, 111
    %v680 = vpop.permute.xlu0 %679
    %681 = vrot.lane.b32.xlu0 %v563, 111
    %v682 = vpop.permute.xlu0 %681
    %683 = vrot.lane.b32.xlu0 %v564, 111
    %v684 = vpop.permute.xlu0 %683
    %685 = vrot.lane.b32.xlu0 %v565, 111
    %v686 = vpop.permute.xlu0 %685
    %v687 = vsel %vm308, %v684, %v686
    %v688 = vsel %vm308, %v682, %v684
    %v689 = vsel %vm308, %v680, %v682
    %v690 = vsel %vm308, %v686, %v680
    %v691 = vmul.f32 %v689, %v316
    %v692 = vmul.f32 %v688, %v320
    %v693 = vmul.f32 %v687, %v324
    %v694 = vmul.f32 %v690, %v328
    %v695 = vld [vmem:[%s4] sm:$0x7]
    %697 = vset.pattern.permute.xlu0 0
    %698 = vperm.xlu0 %697, %v695
    %v699 = vpop.permute.xlu0 %698
    %vm701 = vcmask 588800
    %v703 = vsel %vm701, %v566, 0
    %705 = vmatprep.subr.mxu0 %v580
    %706 = vmatpush1.msra.mxu0 %v579
    %707 = vmatprep.subr.mxu0 %v596
    %708 = vmatpush1.msra.mxu0 %v595
    %709 = vmatprep.subr.mxu0 %v612
    %710 = vmatpush1.msra.mxu0 %v611
    %711 = vmatprep.subr.mxu0 %v628
    %712 = vmatpush1.msra.mxu0 %v627
    %713 = vmatprep.subr.mxu0 %v563
    %714 = vmatpush1.msra.mxu0 %v562
    %715 = vmatprep.subr.mxu0 %v644
    %716 = vmatpush1.msra.mxu0 %v643
    %717 = vmatprep.subr.mxu0 %v660
    %718 = vmatpush1.msra.mxu0 %v659
    %719 = vmatprep.subr.mxu0 %v676
    %720 = vmatpush1.msra.mxu0 %v675
    %721 = vmatprep.subr.mxu0 %v692
    %722 = vmatpush1.msra.mxu0 %v691
    %723 = vmatprep.subr.mxu0 0.0
    %724 = vmatpush1.msra.mxu0 0.0
    %725 = vmatprep.subr.mxu0 0.0
    %726 = vmatpush1.msra.mxu0 0.0
    %727 = vmatprep.subr.mxu0 0.0
    %728 = vmatpush1.msra.mxu0 0.0
    %729 = vmatprep.subr.mxu0 0.0
    %730 = vmatpush1.msra.mxu0 0.0
    %731 = vmatprep.subr.mxu0 0.0
    %732 = vmatpush1.msra.mxu0 0.0
    %733 = vmatprep.subr.mxu0 0.0
    %734 = vmatpush1.msra.mxu0 0.0
    %735 = vmatprep.subr.mxu0 0.0
    %736 = vmatpush1.msra.mxu0 0.0
    %737 = vmatprep.subr.mxu0 0.0
    %738 = vmatpush1.msra.mxu0 0.0
    %739 = vmatprep.subr.mxu0 0.0
    %740 = vmatpush1.msra.mxu0 0.0
    %741 = vmatprep.subr.mxu0 0.0
    %742 = vmatpush1.msra.mxu0 0.0
    %743 = vmatprep.subr.mxu0 0.0
    %744 = vmatpush1.msra.mxu0 0.0
    %745 = vmatprep.subr.mxu0 0.0
    %746 = vmatpush1.msra.mxu0 0.0
    %747 = vmatprep.subr.mxu0 0.0
    %748 = vmatpush1.msra.mxu0 0.0
    %749 = vmatprep.subr.mxu0 0.0
    %750 = vmatpush1.msra.mxu0 0.0
    %751 = vmatprep.subr.mxu0 0.0
    %752 = vmatpush1.msra.mxu0 0.0
    %753 = vmatprep.subr.mxu0 0.0
    %754 = vmatpush1.msra.mxu0 0.0
    %755 = vmatprep.subr.mxu0 0.0
    %756 = vmatpush1.msra.mxu0 0.0
    %757 = vmatprep.subr.mxu0 0.0
    %758 = vmatpush1.msra.mxu0 0.0
    %759 = vmatprep.subr.mxu0 0.0
    %760 = vmatpush1.msra.mxu0 0.0
    %761 = vmatprep.subr.mxu0 0.0
    %762 = vmatpush1.msra.mxu0 0.0
    %763 = vmatprep.subr.mxu0 0.0
    %764 = vmatpush1.msra.mxu0 0.0
    %765 = vmatprep.subr.mxu0 0.0
    %766 = vmatpush1.msra.mxu0 0.0
    %767 = vmatprep.subr.mxu0 0.0
    %768 = vmatpush1.msra.mxu0 0.0
    %769 = vmatprep.mubr.f32.mxu0 0.0
    %770 = vmatmul.mubr.f32.gmra.mrb[0].mxu0 %v703
    %v771 = vpop.f32.mrb[0].mxu0
    %v772 = vadd.f32 %v699, %v771
    %v773 = vpop.f32.mrb[0].mxu0
    %v774 = vadd.f32 %v699, %v773
    %775 = vdwg.mxu0
    %776 = vmatprep.subr.mxu0 %v582
    %777 = vmatpush1.msra.mxu0 %v581
    %778 = vmatprep.subr.mxu0 %v598
    %779 = vmatpush1.msra.mxu0 %v597
    %780 = vmatprep.subr.mxu0 %v614
    %781 = vmatpush1.msra.mxu0 %v613
    %782 = vmatprep.subr.mxu0 %v630
    %783 = vmatpush1.msra.mxu0 %v629
    %784 = vmatprep.subr.mxu0 %v565
    %785 = vmatpush1.msra.mxu0 %v564
    %786 = vmatprep.subr.mxu0 %v646
    %787 = vmatpush1.msra.mxu0 %v645
    %788 = vmatprep.subr.mxu0 %v662
    %789 = vmatpush1.msra.mxu0 %v661
    %790 = vmatprep.subr.mxu0 %v678
    %791 = vmatpush1.msra.mxu0 %v677
    %792 = vmatprep.subr.mxu0 %v694
    %793 = vmatpush1.msra.mxu0 %v693
    %794 = vmatprep.subr.mxu0 0.0
    %795 = vmatpush1.msra.mxu0 0.0
    %796 = vmatprep.subr.mxu0 0.0
    %797 = vmatpush1.msra.mxu0 0.0
    %798 = vmatprep.subr.mxu0 0.0
    %799 = vmatpush1.msra.mxu0 0.0
    %800 = vmatprep.subr.mxu0 0.0
    %801 = vmatpush1.msra.mxu0 0.0
    %802 = vmatprep.subr.mxu0 0.0
    %803 = vmatpush1.msra.mxu0 0.0
    %804 = vmatprep.subr.mxu0 0.0
    %805 = vmatpush1.msra.mxu0 0.0
    %806 = vmatprep.subr.mxu0 0.0
    %807 = vmatpush1.msra.mxu0 0.0
    %808 = vmatprep.subr.mxu0 0.0
    %809 = vmatpush1.msra.mxu0 0.0
    %810 = vmatprep.subr.mxu0 0.0
    %811 = vmatpush1.msra.mxu0 0.0
    %812 = vmatprep.subr.mxu0 0.0
    %813 = vmatpush1.msra.mxu0 0.0
    %814 = vmatprep.subr.mxu0 0.0
    %815 = vmatpush1.msra.mxu0 0.0
    %816 = vmatprep.subr.mxu0 0.0
    %817 = vmatpush1.msra.mxu0 0.0
    %818 = vmatprep.subr.mxu0 0.0
    %819 = vmatpush1.msra.mxu0 0.0
    %820 = vmatprep.subr.mxu0 0.0
    %821 = vmatpush1.msra.mxu0 0.0
    %822 = vmatprep.subr.mxu0 0.0
    %823 = vmatpush1.msra.mxu0 0.0
    %824 = vmatprep.subr.mxu0 0.0
    %825 = vmatpush1.msra.mxu0 0.0
    %826 = vmatprep.subr.mxu0 0.0
    %827 = vmatpush1.msra.mxu0 0.0
    %828 = vmatprep.subr.mxu0 0.0
    %829 = vmatpush1.msra.mxu0 0.0
    %830 = vmatprep.subr.mxu0 0.0
    %831 = vmatpush1.msra.mxu0 0.0
    %832 = vmatprep.subr.mxu0 0.0
    %833 = vmatpush1.msra.mxu0 0.0
    %834 = vmatprep.subr.mxu0 0.0
    %835 = vmatpush1.msra.mxu0 0.0
    %836 = vmatprep.subr.mxu0 0.0
    %837 = vmatpush1.msra.mxu0 0.0
    %838 = vmatprep.subr.mxu0 0.0
    %839 = vmatpush1.msra.mxu0 0.0
    %840 = vmatprep.mubr.f32.mxu0 0.0
    %841 = vmatmul.mubr.f32.gmra.mrb[0].mxu0 %v703
    %v842 = vpop.f32.mrb[0].mxu0
    %v843 = vadd.f32 %v699, %v842
    %v844 = vpop.f32.mrb[0].mxu0
    %v845 = vadd.f32 %v699, %v844
    %846 = vdwg.mxu0
    %v851 = vcombine.low %v772, %v774
    %v852 = vcombine.low %v843, %v845
    %855 = vst [vmem:[#allocation7] sm:$0x77] %v851
    %856 = vst [vmem:[#allocation7 + $0x8] sm:$0x77] %v852
    // Predicated region
    $region34: #{encdec_fused.1} parent=1 // pred_check
      _
    $region35: #{encdec_fused.1} parent=1 // pred_check_branch
      %858 = sbr.rel (0) target = $region37
    $region36: #{encdec_fused.1} parent=1 // pred_region
      %s860 = ssub.s32 256, 256
      %861 = vsyncadd [#allocation4], %s860
      %s863 = sshll.u32 [#allocation7], 4
      %s864 = int_to_ptr.vmem [resolvable:$true] %s863
      %866 = dma.vmem_to_hbm [thread:$0]  %s864, 256, %s6, [#allocation4]
    $region37: #{encdec_fused.1} parent=1 // pred_fallthru
      _
    // Predicated region
    $region38: #{encdec_fused.1} parent=1 // pred_check
      _
    $region39: #{encdec_fused.1} parent=1 // pred_check_branch
      %868 = sbr.rel (0) target = $region41
    $region40: #{encdec_fused.1} parent=1 // pred_region
      %869 = dma.done [#allocation4], 256
    $region41: #{encdec_fused.1} parent=1 // pred_fallthru
      _
    %870 = vsyncpa [#allocation3], 1
    %871 = vsyncpa [#allocation6], 1
    %872 = vsyncpa [#allocation4], 1

</llo_original>
